<compile_context>
chip_gen: v5e
topology: v5e:2x2
jax: 0.10.0
libtpu: 0.0.40
codegen_flags: <defaults>
</compile_context>

<pallas_src>
import jax
import jax.numpy as jnp
from jax.experimental import pallas as pl
from jax.experimental.pallas import tpu as pltpu

HIDDEN_NEURONS = 20
NUM_CLASSES = 10
LANE = 128                    # TPU lane width: feature/class axes padded to this
_NEG_MASK = -1e30             # folded into padded b2 lanes -> exp() == 0 in softmax


def _round_up(x, m):
    return (x + m - 1) // m * m


def mlp_softmax_kernel(x_ref, w1_ref, b1_ref, w2_ref, b2_ref, o_ref):
    # x_ref : [TB, D]     f32   (batch tile, streamed from HBM; cast to bf16 here)
    # w1_ref: [D, 128]    bf16  (resident)   b1_ref: [1, 128] f32 (zeros in pad lanes)
    # w2_ref: [128, 128]  bf16  (resident)   b2_ref: [1, 128] f32 (-1e30 in pad lanes)
    # o_ref : [TB, 128]   bf16  (padded class lanes come out exactly 0)

    # ----- layer 1: Linear + ReLU (bf16 MXU matmul, f32 accumulate) -----
    x = x_ref[...].astype(jnp.bfloat16)          # in-register cast, free VPU work
    h = jnp.dot(x, w1_ref[...], preferred_element_type=jnp.float32)
    h = jnp.maximum(h + b1_ref[...], 0.0)

    # ----- layer 2: Linear (bf16 MXU matmul, f32 accumulate) -----
    logits = jnp.dot(h.astype(jnp.bfloat16), w2_ref[...],
                     preferred_element_type=jnp.float32)
    logits = logits + b2_ref[...]                # padded lanes -> -1e30 (masked out)

    # ----- softmax over the class axis (numerically stable) -----
    m = jnp.max(logits, axis=-1, keepdims=True)
    e = jnp.exp(logits - m)
    denom = jnp.sum(e, axis=-1, keepdims=True)
    o_ref[...] = (e * pl.reciprocal(denom, approx=True)).astype(o_ref.dtype)


def prepare_params(w1, b1, w2, b2, input_neurons):
    """One-time weight prep, hoisted out of the per-call path.

    w1: [20, D]  b1: [20]  w2: [10, 20]  b2: [10]  (PyTorch [out, in] layout)
    Returns transposed, lane-padded weights; w1/w2 cast to bf16.  w1_t has exactly
    D rows so x needs no padding at all.
    """
    D = input_neurons

    w1_t = jnp.zeros((D, LANE), jnp.float32)
    w1_t = w1_t.at[:, :HIDDEN_NEURONS].set(w1.T.astype(jnp.float32))
    w1_t = w1_t.astype(jnp.bfloat16)

    b1_p = jnp.zeros((1, LANE), jnp.float32).at[0, :HIDDEN_NEURONS].set(
        b1.astype(jnp.float32))

    w2_t = jnp.zeros((LANE, LANE), jnp.float32)
    w2_t = w2_t.at[:HIDDEN_NEURONS, :NUM_CLASSES].set(w2.T.astype(jnp.float32))
    w2_t = w2_t.astype(jnp.bfloat16)

    b2_p = jnp.full((1, LANE), _NEG_MASK, jnp.float32).at[0, :NUM_CLASSES].set(
        b2.astype(jnp.float32))

    return w1_t, b1_p, w2_t, b2_p


def _choose_tb(B, D):
    """Batch tile: multiple grid steps for pipelining / dual-TC, VMEM-guarded."""
    if B <= 128:
        return B                                   # single full-batch tile (legal for any B)
    tb = _round_up(pl.cdiv(B, 8), 8)               # aim for >= 8 grid steps
    tb = max(128, min(tb, 512))                    # floor 128, cap 512
    # VMEM guard: two f32 x buffers + two bf16 out buffers per tile within ~32 MiB.
    budget = 32 * 1024 * 1024
    per_row = 2 * D * 4 + 2 * LANE * 2
    max_tb = max(8, (budget // per_row) // 8 * 8)
    return min(tb, max_tb)


def _vmem_limit_bytes(TB, D):
    need = (2 * TB * D * 4            # x: f32, double-buffered
            + 2 * TB * LANE * 2       # out: bf16, double-buffered
            + 2 * D * LANE * 2        # w1: bf16
            + 2 * LANE * LANE * 2     # w2: bf16
            + 4 * LANE * 4 * 2        # biases
            + (4 << 20))              # slack for temporaries / f32 intermediates
    return max(16 * 1024 * 1024, min(_round_up(need, 1 << 20), 48 * 1024 * 1024))


@jax.jit
def net_forward(x_nchw, params):
    """Forward pass of `Net`: returns [B, NUM_CLASSES] softmax probabilities (bf16)."""
    w1_t, b1_p, w2_t, b2_p = params
    B = x_nchw.shape[0]
    D = 1
    for s in x_nchw.shape[1:]:
        D *= s

    # flatten(x, 1) — a free reshape of the contiguous input; NO cast, NO pad.
    x_flat = x_nchw.reshape(B, D)

    TB = _choose_tb(B, D)
    grid = (pl.cdiv(B, TB),)

    cost = pl.CostEstimate(
        flops=2 * B * D * LANE + 2 * B * LANE * LANE,
        transcendentals=B * LANE,
        bytes_accessed=(B * D * 4            # x read (f32, once)
                        + D * LANE * 2       # w1 (bf16)
                        + LANE * LANE * 2    # w2 (bf16)
                        + 2 * LANE * 4       # biases (f32)
                        + B * LANE * 2),     # output write (bf16)
    )

    out = pl.pallas_call(
        mlp_softmax_kernel,
        out_shape=jax.ShapeDtypeStruct((B, LANE), jnp.bfloat16),
        grid=grid,
        in_specs=[
            pl.BlockSpec((TB, D), lambda i: (i, 0)),       # x: streamed per batch tile
            pl.BlockSpec((D, LANE), lambda i: (0, 0)),     # weights stay resident
            pl.BlockSpec((1, LANE), lambda i: (0, 0)),
            pl.BlockSpec((LANE, LANE), lambda i: (0, 0)),
            pl.BlockSpec((1, LANE), lambda i: (0, 0)),
        ],
        out_specs=pl.BlockSpec((TB, LANE), lambda i: (i, 0)),
        compiler_params=pltpu.CompilerParams(
            dimension_semantics=("parallel",),
            vmem_limit_bytes=_vmem_limit_bytes(TB, D),
        ),
        cost_estimate=cost,
    )(x_flat, w1_t, b1_p, w2_t, b2_p)

    # Padded class lanes are exactly 0; slice to the 10 real classes (bf16, so this
    # re-read is half the size it used to be).
    return out[:, :NUM_CLASSES]


if __name__ == "__main__":
    key = jax.random.PRNGKey(0)
    k_x, k_w1, k_b1, k_w2, k_b2 = jax.random.split(key, 5)

    # Small MNIST-like input: batch=2, channels=1, spatial=16x16 -> D = 256
    B, C, H, W = 2, 1, 16, 16
    D = C * H * W

    x = jax.random.normal(k_x, (B, C, H, W), dtype=jnp.float32)

    # Deterministic parameter init (PyTorch Linear-style uniform bounds).
    bound1 = 1.0 / (D ** 0.5)
    w1 = jax.random.uniform(k_w1, (HIDDEN_NEURONS, D), jnp.float32, -bound1, bound1)
    b1 = jax.random.uniform(k_b1, (HIDDEN_NEURONS,), jnp.float32, -bound1, bound1)

    bound2 = 1.0 / (HIDDEN_NEURONS ** 0.5)
    w2 = jax.random.uniform(k_w2, (NUM_CLASSES, HIDDEN_NEURONS), jnp.float32, -bound2, bound2)
    b2 = jax.random.uniform(k_b2, (NUM_CLASSES,), jnp.float32, -bound2, bound2)

    params = prepare_params(w1, b1, w2, b2, input_neurons=D)   # one-time prep
    out = net_forward(x, params)
    out = jax.block_until_ready(out)

    # Reference: quantize to bf16 the same way the kernel does (x, w1, h, w2 in bf16,
    # f32 accumulation), then f32 softmax.
    x_q = x.reshape(B, -1).astype(jnp.bfloat16).astype(jnp.float32)
    w1_q = w1.astype(jnp.bfloat16).astype(jnp.float32)
    h_ref = jnp.maximum(x_q @ w1_q.T + b1, 0.0)
    h_q = h_ref.astype(jnp.bfloat16).astype(jnp.float32)
    w2_q = w2.astype(jnp.bfloat16).astype(jnp.float32)
    logits_ref = h_q @ w2_q.T + b2
    ref = jax.nn.softmax(logits_ref, axis=1)

    out_f32 = out.astype(jnp.float32)
    assert out.shape == (B, NUM_CLASSES)
    max_err = float(jnp.max(jnp.abs(out_f32 - ref)))
    assert jnp.allclose(out_f32, ref, atol=8e-3, rtol=2e-2), max_err
    assert jnp.allclose(jnp.sum(out_f32, axis=1), jnp.ones((B,)), atol=2e-2)

    print("KERNEL_OK")
</pallas_src>

<mosaic_0001>
module attributes {stable_mosaic.version = 11 : i64} {
  func.func @mlp_softmax_kernel(%arg0: i32, %arg1: memref<2x256xf32, #tpu.memory_space<vmem>>, %arg2: memref<256x128xbf16, #tpu.memory_space<vmem>>, %arg3: memref<1x128xf32, #tpu.memory_space<vmem>>, %arg4: memref<128x128xbf16, #tpu.memory_space<vmem>>, %arg5: memref<1x128xf32, #tpu.memory_space<vmem>>, %arg6: memref<2x128xbf16, #tpu.memory_space<vmem>>) attributes {dimension_semantics = [#tpu.dimension_semantics<parallel>], iteration_bounds = array<i64: 1>, scalar_prefetch = 0 : i64, scratch_operands = 0 : i64, tpu.core_type = #tpu.core_type<tc>, window_params = [{transform_indices = @transform_0, window_bounds = array<i64: 2, 256>}, {pipeline_mode = #tpu.pipeline_mode<synchronous>, transform_indices = @transform_1, window_bounds = array<i64: 256, 128>}, {pipeline_mode = #tpu.pipeline_mode<synchronous>, transform_indices = @transform_2, window_bounds = array<i64: 1, 128>}, {pipeline_mode = #tpu.pipeline_mode<synchronous>, transform_indices = @transform_3, window_bounds = array<i64: 128, 128>}, {pipeline_mode = #tpu.pipeline_mode<synchronous>, transform_indices = @transform_4, window_bounds = array<i64: 1, 128>}, {transform_indices = @transform_5, window_bounds = array<i64: 2, 128>}]} {
    %c0 = arith.constant 0 : index
    %c0_0 = arith.constant 0 : index
    %0 = vector.load %arg1[%c0, %c0_0] : memref<2x256xf32, #tpu.memory_space<vmem>>, vector<2x256xf32>
    %1 = arith.truncf %0 : vector<2x256xf32> to vector<2x256xbf16>
    %c0_1 = arith.constant 0 : index
    %c0_2 = arith.constant 0 : index
    %2 = vector.load %arg2[%c0_1, %c0_2] : memref<256x128xbf16, #tpu.memory_space<vmem>>, vector<256x128xbf16>
    %cst = arith.constant dense<0.000000e+00> : vector<2x128xf32>
    %3 = tpu.matmul %1, %2, %cst {dimension_numbers = #tpu.dot_dimension_numbers<[1], [0], [0], [1], [0, 0, 1, 1], [], []>} : vector<2x256xbf16>, vector<256x128xbf16>, vector<2x128xf32> -> vector<2x128xf32>
    %c0_3 = arith.constant 0 : index
    %c0_4 = arith.constant 0 : index
    %4 = vector.load %arg3[%c0_3, %c0_4] : memref<1x128xf32, #tpu.memory_space<vmem>>, vector<1x128xf32>
    %5 = vector.broadcast %4 : vector<1x128xf32> to vector<2x128xf32>
    %6 = arith.addf %3, %5 : vector<2x128xf32>
    %cst_5 = arith.constant 0.000000e+00 : f32
    %7 = vector.broadcast %cst_5 : f32 to vector<2x128xf32>
    %8 = arith.maximumf %6, %7 : vector<2x128xf32>
    %9 = arith.truncf %8 : vector<2x128xf32> to vector<2x128xbf16>
    %c0_6 = arith.constant 0 : index
    %c0_7 = arith.constant 0 : index
    %10 = vector.load %arg4[%c0_6, %c0_7] : memref<128x128xbf16, #tpu.memory_space<vmem>>, vector<128x128xbf16>
    %cst_8 = arith.constant dense<0.000000e+00> : vector<2x128xf32>
    %11 = tpu.matmul %9, %10, %cst_8 {dimension_numbers = #tpu.dot_dimension_numbers<[1], [0], [0], [1], [0, 0, 1, 1], [], []>} : vector<2x128xbf16>, vector<128x128xbf16>, vector<2x128xf32> -> vector<2x128xf32>
    %c0_9 = arith.constant 0 : index
    %c0_10 = arith.constant 0 : index
    %12 = vector.load %arg5[%c0_9, %c0_10] : memref<1x128xf32, #tpu.memory_space<vmem>>, vector<1x128xf32>
    %13 = vector.broadcast %12 : vector<1x128xf32> to vector<2x128xf32>
    %14 = arith.addf %11, %13 : vector<2x128xf32>
    %cst_11 = arith.constant dense<0xFF800000> : vector<2xf32>
    %15 = vector.multi_reduction <maximumf>, %14, %cst_11 [1] : vector<2x128xf32> to vector<2xf32>
    %16 = vector.shape_cast %15 : vector<2xf32> to vector<2x1xf32>
    %17 = vector.broadcast %16 : vector<2x1xf32> to vector<2x128xf32>
    %18 = arith.subf %14, %17 : vector<2x128xf32>
    %19 = math.exp %18 : vector<2x128xf32>
    %cst_12 = arith.constant dense<0.000000e+00> : vector<2xf32>
    %20 = vector.multi_reduction <add>, %19, %cst_12 [1] : vector<2x128xf32> to vector<2xf32>
    %21 = vector.shape_cast %20 : vector<2xf32> to vector<2x1xf32>
    %22 = tpu.reciprocal %21 {approx = true} : vector<2x1xf32> -> vector<2x1xf32>
    %23 = vector.broadcast %22 : vector<2x1xf32> to vector<2x128xf32>
    %24 = arith.mulf %19, %23 : vector<2x128xf32>
    %25 = arith.truncf %24 : vector<2x128xf32> to vector<2x128xbf16>
    %c0_13 = arith.constant 0 : index
    %c0_14 = arith.constant 0 : index
    %26 = vector.load %arg6[%c0_13, %c0_14] : memref<2x128xbf16, #tpu.memory_space<vmem>>, vector<2x128xbf16>
    tpu.vector_store %arg6[%c0_13, %c0_14], %25 {strides = array<i32>} : memref<2x128xbf16, #tpu.memory_space<vmem>>, vector<2x128xbf16>,
    return
  }
  func.func @transform_0(%arg0: i32) -> (i32, i32) {
    %c0_i32 = arith.constant 0 : i32
    %c0_i32_0 = arith.constant 0 : i32
    return %arg0, %c0_i32 : i32, i32
  }
  func.func @transform_1(%arg0: i32) -> (i32, i32) {
    %c0_i32 = arith.constant 0 : i32
    %c0_i32_0 = arith.constant 0 : i32
    %c0_i32_1 = arith.constant 0 : i32
    return %c0_i32, %c0_i32_0 : i32, i32
  }
  func.func @transform_2(%arg0: i32) -> (i32, i32) {
    %c0_i32 = arith.constant 0 : i32
    %c0_i32_0 = arith.constant 0 : i32
    %c0_i32_1 = arith.constant 0 : i32
    return %c0_i32, %c0_i32_0 : i32, i32
  }
  func.func @transform_3(%arg0: i32) -> (i32, i32) {
    %c0_i32 = arith.constant 0 : i32
    %c0_i32_0 = arith.constant 0 : i32
    %c0_i32_1 = arith.constant 0 : i32
    return %c0_i32, %c0_i32_0 : i32, i32
  }
  func.func @transform_4(%arg0: i32) -> (i32, i32) {
    %c0_i32 = arith.constant 0 : i32
    %c0_i32_0 = arith.constant 0 : i32
    %c0_i32_1 = arith.constant 0 : i32
    return %c0_i32, %c0_i32_0 : i32, i32
  }
  func.func @transform_5(%arg0: i32) -> (i32, i32) {
    %c0_i32 = arith.constant 0 : i32
    %c0_i32_0 = arith.constant 0 : i32
    return %arg0, %c0_i32 : i32, i32
  }
}

</mosaic_0001>

<llo_original>
// kernel: net_forward.1
$region0: #{net_forward.1}
  #allocation0 [shape = 'u32[]', space=smem, size = 0x4, offset = 0x4, fixed_abs, tag = 'smem constant byte address 0x4 - core index']
  #allocation1 [shape = 'u32[72,128]{1,0:T(1,128)}', space=vmem, size = 0x9000, scoped, tag = 'internal scratch']
  %s0 = inlined_call_operand.vmem [shape: f32[2,256], index: 0, kind: input, shape index: {}]
  %s1 = inlined_call_operand.hbm [shape: bf16[256,128], index: 1, kind: input, shape index: {}]
  %s2 = inlined_call_operand.vmem [shape: f32[1,128], index: 2, kind: input, shape index: {}]
  %s3 = inlined_call_operand.hbm [shape: bf16[128,128], index: 3, kind: input, shape index: {}]
  %s4 = inlined_call_operand.vmem [shape: f32[1,128], index: 4, kind: input, shape index: {}]
  %s5 = inlined_call_operand.hbm [shape: bf16[2,128], index: 5, kind: output, shape index: {}]
  %s6 = sld [smem:[#allocation0]]
  $region38: #{net_forward.1} parent=0
    _
  %s8 = ssub.s32 1, %s6
  %s9 = scalar_select 0, %s8, %s6
  $region1: #{net_forward.1} parent=0
    #allocation2 [shape = 'u8[65536]{0}', space=vmem, size = 0x10000, scoped, tag = 'input window, operand 1, single buffered']
    #allocation3 [shape = 's32[1]{0}', space=sflag, size = 0x4, scoped, tag = 'scoped memory for net_forward.1']
    #allocation4 [shape = 's32[1]{0}', space=sflag, size = 0x4, scoped, tag = 'scoped memory for net_forward.1']
    #allocation5 [shape = 'u8[32768]{0}', space=vmem, size = 0x8000, scoped, tag = 'input window, operand 3, single buffered']
    #allocation6 [shape = 's32[1]{0}', space=sflag, size = 0x4, scoped, tag = 'scoped memory for net_forward.1']
    #allocation7 [shape = 'u8[512]{0}', space=vmem, size = 0x400, scoped, tag = 'output window, operand 0, single buffered']
    %10 = vsyncpa [#allocation3], 0
    %11 = vsyncpa [#allocation6], 0
    %12 = vsyncpa [#allocation4], 0
    // Predicated region
    $region2: #{net_forward.1} parent=1 // pred_check
      _
    $region3: #{net_forward.1} parent=1 // pred_check_branch
      %14 = sbr.rel (0) target = $region5
    $region4: #{net_forward.1} parent=1 // pred_region
      _
    $region5: #{net_forward.1} parent=1 // pred_fallthru
      _
    // Predicated region
    $region6: #{net_forward.1} parent=1 // pred_check
      _
    $region7: #{net_forward.1} parent=1 // pred_check_branch
      %16 = sbr.rel (0) target = $region9
    $region8: #{net_forward.1} parent=1 // pred_region
      %18 = vsyncadd [#allocation3], 0
      %s19 = sshll.u32 %s1, 4
      %s20 = int_to_ptr.hbm [resolvable:$true] %s19
      %s21 = sshll.u32 [#allocation2], 4
      %s22 = int_to_ptr.vmem [resolvable:$true] %s21
      %27 = dma.hbm_to_vmem [thread:$0]  %s20, 2048, %s22, [#allocation3], 64, 64, 4
    $region9: #{net_forward.1} parent=1 // pred_fallthru
      _
    // Predicated region
    $region10: #{net_forward.1} parent=1 // pred_check
      _
    $region11: #{net_forward.1} parent=1 // pred_check_branch
      %29 = sbr.rel (0) target = $region13
    $region12: #{net_forward.1} parent=1 // pred_region
      _
    $region13: #{net_forward.1} parent=1 // pred_fallthru
      _
    // Predicated region
    $region14: #{net_forward.1} parent=1 // pred_check
      _
    $region15: #{net_forward.1} parent=1 // pred_check_branch
      %31 = sbr.rel (0) target = $region17
    $region16: #{net_forward.1} parent=1 // pred_region
      %33 = vsyncadd [#allocation6], 0
      %s34 = sshll.u32 %s3, 4
      %s35 = int_to_ptr.hbm [resolvable:$true] %s34
      %s36 = sshll.u32 [#allocation5], 4
      %s37 = int_to_ptr.vmem [resolvable:$true] %s36
      %42 = dma.hbm_to_vmem [thread:$0]  %s35, 1024, %s37, [#allocation6], 64, 64, 4
    $region17: #{net_forward.1} parent=1 // pred_fallthru
      _
    // Predicated region
    $region18: #{net_forward.1} parent=1 // pred_check
      _
    $region19: #{net_forward.1} parent=1 // pred_check_branch
      %44 = sbr.rel (0) target = $region21
    $region20: #{net_forward.1} parent=1 // pred_region
      _
    $region21: #{net_forward.1} parent=1 // pred_fallthru
      _
    // Predicated region
    $region22: #{net_forward.1} parent=1 // pred_check
      _
    $region23: #{net_forward.1} parent=1 // pred_check_branch
      %46 = sbr.rel (0) target = $region25
    $region24: #{net_forward.1} parent=1 // pred_region
      %48 = dma.done [#allocation3], 2048
    $region25: #{net_forward.1} parent=1 // pred_fallthru
      _
    // Predicated region
    $region26: #{net_forward.1} parent=1 // pred_check
      _
    $region27: #{net_forward.1} parent=1 // pred_check_branch
      %50 = sbr.rel (0) target = $region29
    $region28: #{net_forward.1} parent=1 // pred_region
      %52 = dma.done [#allocation6], 1024
    $region29: #{net_forward.1} parent=1 // pred_fallthru
      _
    %v53 = vld [vmem:[%s0] sm:$0xf]
    %55 = vst [vmem:[#allocation1] ss:$4 sm:$0xff] %v53
    %v56 = vld.sshfl [vmem:[#allocation1] sm:$0xff pattern:$0x73625140]
    %v57 = vld.sshfl [vmem:[#allocation1 + $0x8] sm:$0xff pattern:$0x73625140]
    %v60 = vpack.c.bf16 %v56, %v56
    %v61 = vpack.c.bf16 %v57, %v57
    %v62 = vld [vmem:[#allocation2] sm:$0xf]
    %v63 = vld [vmem:[#allocation2 + $0x4] sm:$0xf]
    %v64 = vld [vmem:[#allocation2 + $0x8] sm:$0xf]
    %v65 = vld [vmem:[#allocation2 + $0xc] sm:$0xf]
    %v66 = vld [vmem:[#allocation2 + $0x10] sm:$0xf]
    %v67 = vld [vmem:[#allocation2 + $0x14] sm:$0xf]
    %v68 = vld [vmem:[#allocation2 + $0x18] sm:$0xf]
    %v69 = vld [vmem:[#allocation2 + $0x1c] sm:$0xf]
    %v70 = vld [vmem:[#allocation2 + $0x20] sm:$0xf]
    %v71 = vld [vmem:[#allocation2 + $0x24] sm:$0xf]
    %v72 = vld [vmem:[#allocation2 + $0x28] sm:$0xf]
    %v73 = vld [vmem:[#allocation2 + $0x2c] sm:$0xf]
    %v74 = vld [vmem:[#allocation2 + $0x30] sm:$0xf]
    %v75 = vld [vmem:[#allocation2 + $0x34] sm:$0xf]
    %v76 = vld [vmem:[#allocation2 + $0x38] sm:$0xf]
    %v77 = vld [vmem:[#allocation2 + $0x3c] sm:$0xf]
    %v78 = vld [vmem:[#allocation2 + $0x40] sm:$0xf]
    %v79 = vld [vmem:[#allocation2 + $0x44] sm:$0xf]
    %v80 = vld [vmem:[#allocation2 + $0x48] sm:$0xf]
    %v81 = vld [vmem:[#allocation2 + $0x4c] sm:$0xf]
    %v82 = vld [vmem:[#allocation2 + $0x50] sm:$0xf]
    %v83 = vld [vmem:[#allocation2 + $0x54] sm:$0xf]
    %v84 = vld [vmem:[#allocation2 + $0x58] sm:$0xf]
    %v85 = vld [vmem:[#allocation2 + $0x5c] sm:$0xf]
    %v86 = vld [vmem:[#allocation2 + $0x60] sm:$0xf]
    %v87 = vld [vmem:[#allocation2 + $0x64] sm:$0xf]
    %v88 = vld [vmem:[#allocation2 + $0x68] sm:$0xf]
    %v89 = vld [vmem:[#allocation2 + $0x6c] sm:$0xf]
    %v90 = vld [vmem:[#allocation2 + $0x70] sm:$0xf]
    %v91 = vld [vmem:[#allocation2 + $0x74] sm:$0xf]
    %v92 = vld [vmem:[#allocation2 + $0x78] sm:$0xf]
    %v93 = vld [vmem:[#allocation2 + $0x7c] sm:$0xf]
    %v94 = vld [vmem:[%s2] sm:$0x1]
    %v96 = vperm.slane %v94, 0
    %v130 = vunpack.c.l.b16 %v62
    %v131 = vunpack.c.l.b16 %v63
    %v132 = vunpack.c.l.b16 %v64
    %v133 = vunpack.c.l.b16 %v65
    %v134 = vunpack.c.l.b16 %v66
    %v135 = vunpack.c.l.b16 %v67
    %v136 = vunpack.c.l.b16 %v68
    %v137 = vunpack.c.l.b16 %v69
    %v138 = vunpack.c.l.b16 %v70
    %v139 = vunpack.c.l.b16 %v71
    %v140 = vunpack.c.l.b16 %v72
    %v141 = vunpack.c.l.b16 %v73
    %v142 = vunpack.c.l.b16 %v74
    %v143 = vunpack.c.l.b16 %v75
    %v144 = vunpack.c.l.b16 %v76
    %v145 = vunpack.c.l.b16 %v77
    %v146 = vunpack.c.l.b16 %v78
    %v147 = vunpack.c.l.b16 %v79
    %v148 = vunpack.c.l.b16 %v80
    %v149 = vunpack.c.l.b16 %v81
    %v150 = vunpack.c.l.b16 %v82
    %v151 = vunpack.c.l.b16 %v83
    %v152 = vunpack.c.l.b16 %v84
    %v153 = vunpack.c.l.b16 %v85
    %v154 = vunpack.c.l.b16 %v86
    %v155 = vunpack.c.l.b16 %v87
    %v156 = vunpack.c.l.b16 %v88
    %v157 = vunpack.c.l.b16 %v89
    %v158 = vunpack.c.l.b16 %v90
    %v159 = vunpack.c.l.b16 %v91
    %v160 = vunpack.c.l.b16 %v92
    %v161 = vunpack.c.l.b16 %v93
    %v162 = vpack.c.b16 %v131, %v130
    %v163 = vpack.c.b16 %v133, %v132
    %v164 = vpack.c.b16 %v135, %v134
    %v165 = vpack.c.b16 %v137, %v136
    %v166 = vpack.c.b16 %v139, %v138
    %v167 = vpack.c.b16 %v141, %v140
    %v168 = vpack.c.b16 %v143, %v142
    %v169 = vpack.c.b16 %v145, %v144
    %v170 = vpack.c.b16 %v147, %v146
    %v171 = vpack.c.b16 %v149, %v148
    %v172 = vpack.c.b16 %v151, %v150
    %v173 = vpack.c.b16 %v153, %v152
    %v174 = vpack.c.b16 %v155, %v154
    %v175 = vpack.c.b16 %v157, %v156
    %v176 = vpack.c.b16 %v159, %v158
    %v177 = vpack.c.b16 %v161, %v160
    %194 = vmatpush.bf16.msra.mxu0 %v169
    %195 = vmatpush.bf16.msra.mxu0 %v168
    %196 = vmatpush.bf16.msra.mxu0 %v167
    %197 = vmatpush.bf16.msra.mxu0 %v166
    %198 = vmatpush.bf16.msra.mxu0 %v165
    %199 = vmatpush.bf16.msra.mxu0 %v164
    %200 = vmatpush.bf16.msra.mxu0 %v163
    %201 = vmatpush.bf16.msra.mxu0 %v162
    %202 = vmatmul.bf16.gmra.mxu0 %v60
    %v203 = vpop.f32.mrf.mxu0
    %v204 = vadd.f32 %v96, %v203
    %v205 = vpop.f32.mrf.mxu0
    %206 = vdwg.mxu0
    %207 = vmatpush.bf16.msra.mxu0 %v177
    %208 = vmatpush.bf16.msra.mxu0 %v176
    %209 = vmatpush.bf16.msra.mxu0 %v175
    %210 = vmatpush.bf16.msra.mxu0 %v174
    %211 = vmatpush.bf16.msra.mxu0 %v173
    %212 = vmatpush.bf16.msra.mxu0 %v172
    %213 = vmatpush.bf16.msra.mxu0 %v171
    %214 = vmatpush.bf16.msra.mxu0 %v170
    %215 = vmatmul.bf16.gmra.mxu0 %v61
    %v216 = vpop.f32.mrf.mxu0
    %v217 = vadd.f32 %v204, %v216
    %v218 = vpop.f32.mrf.mxu0
    %219 = vdwg.mxu0
    %v220 = vmax.f32 %v217, 0.0
    %v221 = vpack.c.bf16 %v220, %v220
    %v222 = vld [vmem:[#allocation5] sm:$0xf]
    %v223 = vld [vmem:[#allocation5 + $0x4] sm:$0xf]
    %v224 = vld [vmem:[#allocation5 + $0x8] sm:$0xf]
    %v225 = vld [vmem:[#allocation5 + $0xc] sm:$0xf]
    %v226 = vld [vmem:[#allocation5 + $0x10] sm:$0xf]
    %v227 = vld [vmem:[#allocation5 + $0x14] sm:$0xf]
    %v228 = vld [vmem:[#allocation5 + $0x18] sm:$0xf]
    %v229 = vld [vmem:[#allocation5 + $0x1c] sm:$0xf]
    %v230 = vld [vmem:[#allocation5 + $0x20] sm:$0xf]
    %v231 = vld [vmem:[#allocation5 + $0x24] sm:$0xf]
    %v232 = vld [vmem:[#allocation5 + $0x28] sm:$0xf]
    %v233 = vld [vmem:[#allocation5 + $0x2c] sm:$0xf]
    %v234 = vld [vmem:[#allocation5 + $0x30] sm:$0xf]
    %v235 = vld [vmem:[#allocation5 + $0x34] sm:$0xf]
    %v236 = vld [vmem:[#allocation5 + $0x38] sm:$0xf]
    %v237 = vld [vmem:[#allocation5 + $0x3c] sm:$0xf]
    %v238 = vld [vmem:[%s4] sm:$0x1]
    %v240 = vperm.slane %v238, 0
    %v258 = vunpack.c.l.b16 %v222
    %v259 = vunpack.c.l.b16 %v223
    %v260 = vunpack.c.l.b16 %v224
    %v261 = vunpack.c.l.b16 %v225
    %v262 = vunpack.c.l.b16 %v226
    %v263 = vunpack.c.l.b16 %v227
    %v264 = vunpack.c.l.b16 %v228
    %v265 = vunpack.c.l.b16 %v229
    %v266 = vunpack.c.l.b16 %v230
    %v267 = vunpack.c.l.b16 %v231
    %v268 = vunpack.c.l.b16 %v232
    %v269 = vunpack.c.l.b16 %v233
    %v270 = vunpack.c.l.b16 %v234
    %v271 = vunpack.c.l.b16 %v235
    %v272 = vunpack.c.l.b16 %v236
    %v273 = vunpack.c.l.b16 %v237
    %v274 = vpack.c.b16 %v259, %v258
    %v275 = vpack.c.b16 %v261, %v260
    %v276 = vpack.c.b16 %v263, %v262
    %v277 = vpack.c.b16 %v265, %v264
    %v278 = vpack.c.b16 %v267, %v266
    %v279 = vpack.c.b16 %v269, %v268
    %v280 = vpack.c.b16 %v271, %v270
    %v281 = vpack.c.b16 %v273, %v272
    %290 = vmatpush.bf16.msra.mxu0 %v281
    %291 = vmatpush.bf16.msra.mxu0 %v280
    %292 = vmatpush.bf16.msra.mxu0 %v279
    %293 = vmatpush.bf16.msra.mxu0 %v278
    %294 = vmatpush.bf16.msra.mxu0 %v277
    %295 = vmatpush.bf16.msra.mxu0 %v276
    %296 = vmatpush.bf16.msra.mxu0 %v275
    %297 = vmatpush.bf16.msra.mxu0 %v274
    %298 = vmatmul.bf16.gmra.mxu0 %v221
    %v299 = vpop.f32.mrf.mxu0
    %v300 = vadd.f32 %v240, %v299
    %v301 = vpop.f32.mrf.mxu0
    %302 = vdwg.mxu0
    %vm303 = vcmask 1041408
    %v304 = vsel %vm303, %v300, -inf
    %305 = vmax.xlane.f32.xlu0 %v304
    %v306 = vpop.xlane.xlu0 %305
    %v307 = vsub.f32 %v300, %v306
    %v308 = vmul.f32 %v307, 1.442695
    %v309 = vpow.pop %v308
    %v310 = vsel %vm303, %v309, 0.0
    %311 = vadd.xlane.f32.xlu0 %v310
    %v312 = vpop.xlane.xlu0 %311
    %v313 = vrcp.pop %v312
    %v314 = vmul.f32 %v309, %v313
    %v315 = vpack.c.bf16 %v314, %v314
    %316 = vst [vmem:[#allocation7] sm:$0x1] %v315
    // Predicated region
    $region30: #{net_forward.1} parent=1 // pred_check
      _
    $region31: #{net_forward.1} parent=1 // pred_check_branch
      %318 = sbr.rel (0) target = $region33
    $region32: #{net_forward.1} parent=1 // pred_region
      %320 = vsyncadd [#allocation4], 0
      %s322 = sshll.u32 [#allocation7], 4
      %s323 = int_to_ptr.vmem [resolvable:$true] %s322
      %s324 = sshll.u32 %s5, 4
      %s325 = int_to_ptr.hbm [resolvable:$true] %s324
      %327 = dma.vmem_to_hbm [thread:$0]  %s323, 16, %s325, [#allocation4]
    $region33: #{net_forward.1} parent=1 // pred_fallthru
      _
    // Predicated region
    $region34: #{net_forward.1} parent=1 // pred_check
      _
    $region35: #{net_forward.1} parent=1 // pred_check_branch
      %329 = sbr.rel (0) target = $region37
    $region36: #{net_forward.1} parent=1 // pred_region
      %331 = dma.done [#allocation4], 16
    $region37: #{net_forward.1} parent=1 // pred_fallthru
      _
    %332 = vsyncpa [#allocation3], 1
    %333 = vsyncpa [#allocation6], 1
    %334 = vsyncpa [#allocation4], 1

</llo_original>
